<compile_context>
chip_gen: v7x
topology: tpu7x:2x2x1
jax: 0.10.0
libtpu: 0.0.40
codegen_flags: <defaults>
</compile_context>

<pallas_src>
import math
import functools

import numpy as np
import jax
import jax.numpy as jnp
from jax.experimental import pallas as pl
from jax.experimental.pallas import tpu as pltpu


# ---------------------------------------------------------------------------
# Kernel 1: fused QKV projection, computed ONCE per row (not per query tile).
# ---------------------------------------------------------------------------
def _qkv_proj_kernel(x_ref, w_ref, b_ref, out_ref, *, compute_dtype):
    x = x_ref[0].astype(compute_dtype)                                # (tq, D)
    qkv = jnp.dot(x, w_ref[...], preferred_element_type=jnp.float32) + b_ref[0]
    out_ref[0] = qkv.astype(out_ref.dtype)                            # (tq, 3D)


# ---------------------------------------------------------------------------
# Kernel 2: attention + residual + LN1 + chunked FFN + residual + LN2.
# ---------------------------------------------------------------------------
def _encoder_layer_kernel(
    bias_ref,            # (1, tq, S)      bf16  additive mask bias (-1e10 / 0)
    x_ref,               # (1, tq, D)      f32   residual query rows
    q_ref,               # (1, H, tq, hd)  cd    pre-projected, pre-scaled Q
    kT_ref,              # (1, H, hd, S)   cd    pre-projected K, pre-transposed
    v_ref,               # (1, H, S, hd)   cd    pre-projected V
    wo_ref, bo_ref,      # (D, D) cd / (1, D) f32
    g1_ref, be1_ref,     # (1, D) f32  LayerNorm 1
    w1_ref, bf1_ref,     # (D, fk) cd / (1, fk) f32  -- current FFN chunk
    w2_ref, bf2_ref,     # (fk, D) cd / (1, D)  f32
    g2_ref, be2_ref,     # (1, D) f32  LayerNorm 2
    out_ref,             # (1, tq, D) f32
    ctx_ref,             # (tq, D) f32  per-head contexts (lane-concatenated)
    acc_ref,             # (tq, D) f32  FFN accumulator
    y1_ref,              # (tq, D) f32  post-LN1 activations
    *, num_heads: int, head_dim: int, eps: float, compute_dtype,
):
    f = pl.program_id(2)
    nf = pl.num_programs(2)

    def layernorm(t, g, b):
        mu = jnp.mean(t, axis=-1, keepdims=True)
        var = jnp.mean((t - mu) ** 2, axis=-1, keepdims=True)
        return (t - mu) * jax.lax.rsqrt(var + eps) * g + b

    # ---- phase 1 (f == 0): multi-head attention + residual + LayerNorm 1 ----
    @pl.when(f == 0)
    def _attention():
        bias = bias_ref[0].astype(jnp.float32)            # (tq, S), same for all heads

        # Static head loop: K/V are already projected, so the per-head working
        # set is only a (tq, S) probability tile plus ref reads; static lane
        # offsets keep the ctx stores cheap.  (For very large H, switch to a
        # fori_loop accumulating per-head output projections instead.)
        for h in range(num_heads):
            q_h = q_ref[0, h]                              # (tq, hd)  cd
            kT_h = kT_ref[0, h]                            # (hd, S)   cd
            v_h = v_ref[0, h]                              # (S, hd)   cd

            # plain NN matmul (K pre-transposed outside the kernel)
            e = jnp.dot(q_h, kT_h, preferred_element_type=jnp.float32) + bias
            e_max = jnp.max(e, axis=-1, keepdims=True)
            p = jnp.exp(e - e_max)
            denom = jnp.sum(p, axis=-1, keepdims=True)
            p = p * pl.reciprocal(denom, approx=True)      # EUP, off the VALU path

            ctx_h = jnp.dot(p.astype(compute_dtype), v_h,
                            preferred_element_type=jnp.float32)       # (tq, hd)
            ctx_ref[:, h * head_dim:(h + 1) * head_dim] = ctx_h

        # single full-width output projection (full MXU contraction width D)
        attn = jnp.dot(ctx_ref[...].astype(compute_dtype), wo_ref[...],
                       preferred_element_type=jnp.float32) + bo_ref[0]

        r1 = x_ref[0] + attn
        y1_ref[...] = layernorm(r1, g1_ref[0], be1_ref[0])

        # reset accumulator for the FFN phase
        acc_ref[...] = jnp.zeros_like(acc_ref)

    # ---- phase 2 (every f): one hidden-dim chunk of the position-wise FFN ----
    y1_c = y1_ref[...].astype(compute_dtype)
    h1 = jnp.dot(y1_c, w1_ref[...], preferred_element_type=jnp.float32) + bf1_ref[0]
    h1 = jnp.maximum(h1, 0.0)
    acc_ref[...] += jnp.dot(h1.astype(compute_dtype), w2_ref[...],
                            preferred_element_type=jnp.float32)

    # ---- phase 3 (f == last): residual + LayerNorm 2 + lane-dense store ----
    @pl.when(f == nf - 1)
    def _finalize():
        r2 = y1_ref[...] + acc_ref[...] + bf2_ref[0]
        out_ref[0] = layernorm(r2, g2_ref[0], be2_ref[0]).astype(out_ref.dtype)


# ---------------------------------------------------------------------------
# Wrapper
# ---------------------------------------------------------------------------
def _nbytes(shape, dtype):
    n = 1
    for d in shape:
        n *= int(d)
    return n * np.dtype(dtype).itemsize


def _pick_tile(total, candidates):
    for c in candidates:
        if c <= total and total % c == 0:
            return c
    return total


def _vmem_cap_bytes():
    try:
        return int(pltpu.get_tpu_info().vmem_capacity_bytes)
    except Exception:
        return 128 << 20   # v5e / v6e default; v7x query normally succeeds


def encoder_layer(x, mask, params, *, num_heads: int, eps: float = 1e-5,
                  q_tile=None, ff_tile=None, compute_dtype=jnp.bfloat16):
    """x: (B, S, D) f32, mask: (B, 1, S, S) int. Returns (B, S, D) f32."""
    B, S, D = x.shape
    H = num_heads
    hd = D // H
    assert hd * H == D, "model_dim must be divisible by num_heads"
    F = params["w1"].shape[1]
    cd = compute_dtype

    # --- tile sizes: large query tiles raise FFN weight reuse per fetch ---
    tq = q_tile if q_tile is not None else (
        S if S <= 512 else _pick_tile(S, (512, 384, 256, 128, 64, 32, 16, 8)))
    assert S % tq == 0 and (tq % 8 == 0 or tq == S), "bad q_tile"
    fk = ff_tile if ff_tile is not None else (
        F if F <= 1024 else _pick_tile(F, (1024, 512, 256, 128)))
    assert F % fk == 0 and (fk % 128 == 0 or fk == F), "bad ff_tile"
    nq, nf = S // tq, F // fk

    cap = _vmem_cap_bytes()
    usable = int(cap * 0.85)   # leave ~15% headroom for Mosaic internal scratch

    # --- fused QKV weights; 1/sqrt(hd) folded into the Q projection ---
    inv = jnp.float32(1.0 / math.sqrt(hd))
    wqkv = jnp.concatenate(
        [params["wq"] * inv, params["wk"], params["wv"]], axis=1).astype(cd)   # (D, 3D)
    bqkv = jnp.concatenate(
        [params["bq"] * inv, params["bk"], params["bv"]], axis=1)              # (1, 3D) f32

    qkv_need = (2 * (_nbytes((1, tq, D), x.dtype) + _nbytes((1, tq, 3 * D), cd))
                + _nbytes((D, 3 * D), cd) + _nbytes((1, 3 * D), jnp.float32)
                + (4 << 20))
    qkv_limit = int(min(max(qkv_need, 16 << 20), usable))

    qkv = pl.pallas_call(
        functools.partial(_qkv_proj_kernel, compute_dtype=cd),
        out_shape=jax.ShapeDtypeStruct((B, S, 3 * D), cd),
        grid=(B, nq),
        in_specs=[
            pl.BlockSpec((1, tq, D), lambda b, qi: (b, qi, 0)),
            pl.BlockSpec((D, 3 * D), lambda b, qi: (0, 0)),
            pl.BlockSpec((1, 3 * D), lambda b, qi: (0, 0)),
        ],
        out_specs=pl.BlockSpec((1, tq, 3 * D), lambda b, qi: (b, qi, 0)),
        compiler_params=pltpu.CompilerParams(
            dimension_semantics=("parallel", "parallel"),
            vmem_limit_bytes=qkv_limit),
    )(x, wqkv, bqkv)

    # layout plumbing only (no FLOPs): head split + K pre-transpose
    q, k, v = jnp.split(qkv, 3, axis=-1)
    qh = q.reshape(B, S, H, hd).transpose(0, 2, 1, 3)    # (B, H, S, hd)
    kT = k.reshape(B, S, H, hd).transpose(0, 2, 3, 1)    # (B, H, hd, S)
    vh = v.reshape(B, S, H, hd).transpose(0, 2, 1, 3)    # (B, H, S, hd)

    # additive mask bias in bf16: 4x less DMA/VMEM than the int32 mask
    neg_bias = jnp.where(mask[:, 0] == 0, jnp.float32(-1e10),
                         jnp.float32(0.0)).astype(jnp.bfloat16)        # (B, S, S)

    wo_c = params["wo"].astype(cd)
    w1_c = params["w1"].astype(cd)
    w2_c = params["w2"].astype(cd)

    kern = functools.partial(
        _encoder_layer_kernel,
        num_heads=H, head_dim=hd, eps=eps, compute_dtype=cd)

    def const_spec(shape):
        zeros = (0,) * len(shape)
        return pl.BlockSpec(shape, lambda b, qi, f: zeros)

    in_specs = [
        pl.BlockSpec((1, tq, S), lambda b, qi, f: (b, qi, 0)),          # mask bias
        pl.BlockSpec((1, tq, D), lambda b, qi, f: (b, qi, 0)),          # x (residual)
        pl.BlockSpec((1, H, tq, hd), lambda b, qi, f: (b, 0, qi, 0)),   # Q
        pl.BlockSpec((1, H, hd, S), lambda b, qi, f: (b, 0, 0, 0)),     # K^T
        pl.BlockSpec((1, H, S, hd), lambda b, qi, f: (b, 0, 0, 0)),     # V
        const_spec((D, D)), const_spec((1, D)),                         # wo, bo
        const_spec((1, D)), const_spec((1, D)),                         # ln1 gamma/beta
        pl.BlockSpec((D, fk), lambda b, qi, f: (0, f)),                 # w1 chunk
        pl.BlockSpec((1, fk), lambda b, qi, f: (0, f)),                 # bf1 chunk
        pl.BlockSpec((fk, D), lambda b, qi, f: (f, 0)),                 # w2 chunk
        const_spec((1, D)),                                             # bf2
        const_spec((1, D)), const_spec((1, D)),                         # ln2 gamma/beta
    ]

    # --- VMEM budget: streamed blocks double-buffered, constants once ---
    streamed = (_nbytes((1, tq, S), jnp.bfloat16)
                + _nbytes((1, tq, D), jnp.float32)
                + _nbytes((1, H, tq, hd), cd)
                + _nbytes((1, H, hd, S), cd)
                + _nbytes((1, H, S, hd), cd)
                + _nbytes((D, fk), cd) + _nbytes((1, fk), jnp.float32)
                + _nbytes((fk, D), cd)
                + _nbytes((1, tq, D), jnp.float32))                      # output tile
    consts = _nbytes((D, D), cd) + 6 * _nbytes((1, D), jnp.float32)
    scratch = 3 * _nbytes((tq, D), jnp.float32)
    need = 2 * streamed + consts + scratch + (8 << 20)
    vmem_limit = int(min(max(need, 16 << 20), usable))

    return pl.pallas_call(
        kern,
        out_shape=jax.ShapeDtypeStruct((B, S, D), jnp.float32),
        grid=(B, nq, nf),
        in_specs=in_specs,
        out_specs=pl.BlockSpec((1, tq, D), lambda b, qi, f: (b, qi, 0)),
        scratch_shapes=[
            pltpu.VMEM((tq, D), jnp.float32),   # per-head contexts (lane-concat)
            pltpu.VMEM((tq, D), jnp.float32),   # FFN accumulator
            pltpu.VMEM((tq, D), jnp.float32),   # post-LN1 activations
        ],
        compiler_params=pltpu.CompilerParams(
            dimension_semantics=("parallel", "parallel", "arbitrary"),
            vmem_limit_bytes=vmem_limit),
    )(
        neg_bias, x, qh, kT, vh,
        wo_c, params["bo"],
        params["g1"], params["beta1"],
        w1_c, params["bf1"], w2_c, params["bf2"],
        params["g2"], params["beta2"],
    )


# ---------------------------------------------------------------------------
# Pure-JAX reference matching the PyTorch module (eval mode).
# ---------------------------------------------------------------------------
def encoder_layer_ref(x, mask, params, *, num_heads: int, eps: float = 1e-5):
    B, S, D = x.shape
    hd = D // num_heads

    q = x @ params["wq"] + params["bq"][0]
    k = x @ params["wk"] + params["bk"][0]
    v = x @ params["wv"] + params["bv"][0]

    def split(t):
        return t.reshape(B, S, num_heads, hd).transpose(0, 2, 1, 3)

    Q, K, V = split(q), split(k), split(v)
    energy = jnp.einsum("bhsd,bhtd->bhst", Q, K) / math.sqrt(hd)
    energy = jnp.where(mask == 0, -1e10, energy)
    attn = jax.nn.softmax(energy, axis=-1)
    ctx = jnp.einsum("bhst,bhtd->bhsd", attn, V)
    ctx = ctx.transpose(0, 2, 1, 3).reshape(B, S, D)
    attn_out = ctx @ params["wo"] + params["bo"][0]

    def ln(t, g, b):
        mu = jnp.mean(t, axis=-1, keepdims=True)
        var = jnp.mean((t - mu) ** 2, axis=-1, keepdims=True)
        return (t - mu) / jnp.sqrt(var + eps) * g[0] + b[0]

    y1 = ln(x + attn_out, params["g1"], params["beta1"])
    ff = (jnp.maximum(y1 @ params["w1"] + params["bf1"][0], 0.0)
          @ params["w2"] + params["bf2"][0])
    return ln(y1 + ff, params["g2"], params["beta2"])


def init_params(key, model_dim, ff_dim):
    ks = jax.random.split(key, 12)
    s = 0.05
    return {
        "wq": jax.random.normal(ks[0], (model_dim, model_dim), jnp.float32) * s,
        "bq": jax.random.normal(ks[1], (1, model_dim), jnp.float32) * s,
        "wk": jax.random.normal(ks[2], (model_dim, model_dim), jnp.float32) * s,
        "bk": jax.random.normal(ks[3], (1, model_dim), jnp.float32) * s,
        "wv": jax.random.normal(ks[4], (model_dim, model_dim), jnp.float32) * s,
        "bv": jax.random.normal(ks[5], (1, model_dim), jnp.float32) * s,
        "wo": jax.random.normal(ks[6], (model_dim, model_dim), jnp.float32) * s,
        "bo": jax.random.normal(ks[7], (1, model_dim), jnp.float32) * s,
        "g1": jnp.ones((1, model_dim), jnp.float32),
        "beta1": jnp.zeros((1, model_dim), jnp.float32),
        "w1": jax.random.normal(ks[8], (model_dim, ff_dim), jnp.float32) * s,
        "bf1": jax.random.normal(ks[9], (1, ff_dim), jnp.float32) * s,
        "w2": jax.random.normal(ks[10], (ff_dim, model_dim), jnp.float32) * s,
        "bf2": jax.random.normal(ks[11], (1, model_dim), jnp.float32) * s,
        "g2": jnp.ones((1, model_dim), jnp.float32),
        "beta2": jnp.zeros((1, model_dim), jnp.float32),
    }


if __name__ == "__main__":
    # Small, lane-dense shapes (D multiple of 128 keeps output stores dense);
    # q_tile=8, ff_tile=128 exercise the query-tile and FFN-chunk grid axes.
    B, S, D, H, F = 2, 16, 128, 4, 256

    key = jax.random.PRNGKey(0)
    kx, km, kp = jax.random.split(key, 3)

    x = jax.random.normal(kx, (B, S, D), jnp.float32)
    # mask: 1 = attend, 0 = masked-out; causal pattern to exercise masked_fill
    mask = (jnp.tril(jnp.ones((S, S), jnp.int32))[None, None]
            .repeat(B, axis=0))                       # (B, 1, S, S)

    params = init_params(kp, D, F)
    ref = encoder_layer_ref(x, mask, params, num_heads=H)

    # Default bf16 compute path (MXU-native on v6e/v7x); f32 accumulation and
    # f32 softmax/LayerNorm keep the result within ~1e-2 of the f32 reference.
    out_bf16 = encoder_layer(x, mask, params, num_heads=H, q_tile=8, ff_tile=128)
    out_bf16 = jax.block_until_ready(out_bf16)
    assert jnp.allclose(out_bf16, ref, atol=3e-2, rtol=3e-2), (
        f"bf16 path: max abs err {jnp.max(jnp.abs(out_bf16 - ref))}")

    # f32 compute path for tight numerical parity with the PyTorch module
    # (tolerance covers the approximate EUP reciprocal in the softmax).
    out_f32 = encoder_layer(x, mask, params, num_heads=H, q_tile=8, ff_tile=128,
                            compute_dtype=jnp.float32)
    out_f32 = jax.block_until_ready(out_f32)
    assert jnp.allclose(out_f32, ref, atol=5e-3, rtol=5e-3), (
        f"f32 path: max abs err {jnp.max(jnp.abs(out_f32 - ref))}")

    print("KERNEL_OK")
</pallas_src>

<mosaic_0001>
module attributes {stable_mosaic.version = 11 : i64} {
  func.func @_qkv_proj_kernel(%arg0: i32, %arg1: i32, %arg2: memref<1x8x128xf32, #tpu.memory_space<vmem>>, %arg3: memref<128x384xbf16, #tpu.memory_space<vmem>>, %arg4: memref<1x384xf32, #tpu.memory_space<vmem>>, %arg5: memref<1x8x384xbf16, #tpu.memory_space<vmem>>) attributes {dimension_semantics = [#tpu.dimension_semantics<parallel>, #tpu.dimension_semantics<parallel>], iteration_bounds = array<i64: 2, 2>, scalar_prefetch = 0 : i64, scratch_operands = 0 : i64, tpu.core_type = #tpu.core_type<tc>, window_params = [{transform_indices = @transform_0, window_bounds = array<i64: 1, 8, 128>}, {pipeline_mode = #tpu.pipeline_mode<synchronous>, transform_indices = @transform_1, window_bounds = array<i64: 128, 384>}, {pipeline_mode = #tpu.pipeline_mode<synchronous>, transform_indices = @transform_2, window_bounds = array<i64: 1, 384>}, {transform_indices = @transform_3, window_bounds = array<i64: 1, 8, 384>}]} {
    %c0 = arith.constant 0 : index
    %c0_0 = arith.constant 0 : index
    %c0_1 = arith.constant 0 : index
    %0 = vector.load %arg2[%c0, %c0_0, %c0_1] : memref<1x8x128xf32, #tpu.memory_space<vmem>>, vector<1x8x128xf32>
    %1 = vector.shape_cast %0 : vector<1x8x128xf32> to vector<8x128xf32>
    %2 = arith.truncf %1 : vector<8x128xf32> to vector<8x128xbf16>
    %c0_2 = arith.constant 0 : index
    %c0_3 = arith.constant 0 : index
    %3 = vector.load %arg3[%c0_2, %c0_3] : memref<128x384xbf16, #tpu.memory_space<vmem>>, vector<128x384xbf16>
    %cst = arith.constant dense<0.000000e+00> : vector<8x384xf32>
    %4 = tpu.matmul %2, %3, %cst {dimension_numbers = #tpu.dot_dimension_numbers<[1], [0], [0], [1], [0, 0, 1, 1], [], []>} : vector<8x128xbf16>, vector<128x384xbf16>, vector<8x384xf32> -> vector<8x384xf32>
    %c0_4 = arith.constant 0 : index
    %c0_5 = arith.constant 0 : index
    %5 = vector.load %arg4[%c0_4, %c0_5] : memref<1x384xf32, #tpu.memory_space<vmem>>, vector<1x384xf32>
    %6 = vector.shape_cast %5 : vector<1x384xf32> to vector<384xf32>
    %7 = vector.shape_cast %6 : vector<384xf32> to vector<1x384xf32>
    %8 = vector.broadcast %7 : vector<1x384xf32> to vector<8x384xf32>
    %9 = arith.addf %4, %8 : vector<8x384xf32>
    %10 = arith.truncf %9 : vector<8x384xf32> to vector<8x384xbf16>
    %c0_6 = arith.constant 0 : index
    %c0_7 = arith.constant 0 : index
    %c0_8 = arith.constant 0 : index
    %11 = vector.load %arg5[%c0_6, %c0_7, %c0_8] : memref<1x8x384xbf16, #tpu.memory_space<vmem>>, vector<1x8x384xbf16>
    %12 = vector.shape_cast %11 : vector<1x8x384xbf16> to vector<8x384xbf16>
    %13 = vector.shape_cast %10 : vector<8x384xbf16> to vector<1x8x384xbf16>
    tpu.vector_store %arg5[%c0_6, %c0_7, %c0_8], %13 {strides = array<i32>} : memref<1x8x384xbf16, #tpu.memory_space<vmem>>, vector<1x8x384xbf16>,
    return
  }
  func.func @transform_0(%arg0: i32, %arg1: i32) -> (i32, i32, i32) {
    %c0_i32 = arith.constant 0 : i32
    %c0_i32_0 = arith.constant 0 : i32
    return %arg0, %arg1, %c0_i32 : i32, i32, i32
  }
  func.func @transform_1(%arg0: i32, %arg1: i32) -> (i32, i32) {
    %c0_i32 = arith.constant 0 : i32
    %c0_i32_0 = arith.constant 0 : i32
    %c0_i32_1 = arith.constant 0 : i32
    return %c0_i32, %c0_i32_0 : i32, i32
  }
  func.func @transform_2(%arg0: i32, %arg1: i32) -> (i32, i32) {
    %c0_i32 = arith.constant 0 : i32
    %c0_i32_0 = arith.constant 0 : i32
    %c0_i32_1 = arith.constant 0 : i32
    return %c0_i32, %c0_i32_0 : i32, i32
  }
  func.func @transform_3(%arg0: i32, %arg1: i32) -> (i32, i32, i32) {
    %c0_i32 = arith.constant 0 : i32
    %c0_i32_0 = arith.constant 0 : i32
    return %arg0, %arg1, %c0_i32 : i32, i32, i32
  }
}

</mosaic_0001>

<llo_original>
// kernel: tpu_custom_call.1
$region0: #{tpu_custom_call.1}
  #allocation0 [shape = 'u32[]', space=smem, size = 0x4, offset = 0x4, fixed_abs, tag = 'smem constant byte address 0x4 - core index']
  #allocation1 [shape = 'u32[144,128]{1,0:T(1,128)}', space=vmem, size = 0x12000, scoped, tag = 'internal scratch']
  %s0 = inlined_call_operand.hbm [shape: f32[2,16,128], index: 0, kind: input, shape index: {}]
  %s1 = inlined_call_operand.hbm [shape: bf16[128,384], index: 1, kind: input, shape index: {}]
  %s2 = inlined_call_operand.vmem [shape: f32[1,384], index: 2, kind: input, shape index: {}]
  %s3 = inlined_call_operand.hbm [shape: bf16[2,16,384], index: 3, kind: output, shape index: {}]
  %s4 = sld [smem:[#allocation0]]
  $region53: #{tpu_custom_call.1} parent=0
    _
  %s6 = ssub.s32 1, %s4
  %s7 = scalar_select 0, %s6, %s4
  $region1: #{tpu_custom_call.1} parent=0
    #allocation2 [shape = 'u8[8192]{0}', space=vmem, size = 0x2000, scoped, tag = 'input window, operand 0']
    #allocation3 [shape = 's32[2]{0}', space=sflag, size = 0x8, scoped, tag = 'scoped memory for tpu_custom_call.1']
    #allocation4 [shape = 's32[2]{0}', space=sflag, size = 0x8, scoped, tag = 'scoped memory for tpu_custom_call.1']
    #allocation5 [shape = 'u8[98304]{0}', space=vmem, size = 0x18000, scoped, tag = 'input window, operand 1, single buffered']
    #allocation6 [shape = 's32[1]{0}', space=sflag, size = 0x4, scoped, tag = 'scoped memory for tpu_custom_call.1']
    #allocation7 [shape = 'u8[12288]{0}', space=vmem, size = 0x3000, scoped, tag = 'output window, operand 0']
    %8 = vsyncpa [#allocation3], 0
    %s9 = scalar_lea.sflag [#allocation3], 1
    %10 = vsyncpa %s9, 0
    %11 = vsyncpa [#allocation6], 0
    %12 = vsyncpa [#allocation4], 0
    %s13 = scalar_lea.sflag [#allocation4], 1
    %14 = vsyncpa %s13, 0
    loop: start=0, step=1, limit=6
    $region2: #{tpu_custom_call.1} parent=1 // loop_pre_header
      _
    $region3: #{tpu_custom_call.1} parent=1 // loop_header
      %s16 = sphi 0, %s20
      %p17 = scmp.ge.s32.totalorder %s16, 6
      %s23 = sphi 0, %s35
      %s24 = sphi 0, %s31
      %s25 = sphi 0, %s23
      %s26 = sphi 0, %s24
      %s27 = sphi 0, %s25
      %s28 = sphi 0, %s26
      %s40 = sphi 0, %s42
      %s43 = sphi 0, %s40
      %s44 = sphi 0, %s43
      %s60 = sphi 0, %s44
      %s64 = sphi 0, %s64
      %s66 = sphi 0, %s64
      %s67 = sphi 0, %s66
      %s81 = sphi 0, %s67
      %s85 = sphi 0, %s85
      %s87 = sphi 0, %s85
      %s88 = sphi 0, %s87
      %s102 = sphi 0, %s88
      %s110 = sphi 0, %s112
      %s113 = sphi 0, %s110
      %s114 = sphi 0, %s113
      %s130 = sphi 0, %s114
    $region4: #{tpu_custom_call.1} parent=1 // loop_header_branch
      %19 = sbr.rel (%p17) target = $region8
    $region5: #{tpu_custom_call.1} parent=1 // loop_body
      %s21 = ssub.s32 %s16, 1
      %s22 = ssub.s32 %s16, 2
      %s29 = sadd.s32 1, %s24
      %p30 = scmp.ge.s32.totalorder %s29, 2
      %s31 = scalar_select %p30, 0, %s29
      %s32 = sadd.s32 1, %s23
      %s33 = scalar_select %p30, %s32, %s23
      %p34 = scmp.ge.s32.totalorder %s33, 2
      %s35 = scalar_select %p34, 0, %s33
      %s36 = ssub.s32 %s23, %s35
      %s37 = ssub.s32 %s24, %s31
      %s38 = sor.u32 %s36, %s37
      %p39 = scmp.eq.s32.totalorder %s38, 0
      %s41 = sadd.s32 %s40, 1
      %s42 = scalar_select %p39, %s40, %s41
      %p45 = pneg %p39
      %p46 = scmp.eq.s32.totalorder %s16, 3
      %p47 = por %p45, %p46
      %p48 = scmp.ne.s32.totalorder %s40, %s43
      %p49 = scmp.eq.s32.totalorder %s16, 0
      %p50 = por %p48, %p49
      %p51 = scmp.ne.s32.totalorder %s40, %s43
      %p52 = scmp.eq.s32.totalorder %s21, 3
      %p53 = por %p51, %p52
      %p54 = scmp.ne.s32.totalorder %s43, %s44
      %p55 = scmp.eq.s32.totalorder %s21, 0
      %p56 = por %p54, %p55
      %p57 = scmp.ne.s32.totalorder %s43, %s44
      %p58 = scmp.eq.s32.totalorder %s22, 3
      %p59 = por %p57, %p58
      %p61 = scmp.ne.s32.totalorder %s44, %s60
      %p62 = scmp.eq.s32.totalorder %s22, 0
      %p63 = por %p61, %p62
      %s65 = sadd.s32 %s64, 1
      %p68 = scmp.eq.s32.totalorder %s16, 3
      %p69 = scmp.ne.s32.totalorder %s64, %s66
      %p70 = scmp.eq.s32.totalorder %s16, 0
      %p71 = por %p69, %p70
      %p72 = scmp.ne.s32.totalorder %s64, %s66
      %p73 = scmp.eq.s32.totalorder %s21, 3
      %p74 = por %p72, %p73
      %p75 = scmp.ne.s32.totalorder %s66, %s67
      %p76 = scmp.eq.s32.totalorder %s21, 0
      %p77 = por %p75, %p76
      %p78 = scmp.ne.s32.totalorder %s66, %s67
      %p79 = scmp.eq.s32.totalorder %s22, 3
      %p80 = por %p78, %p79
      %p82 = scmp.ne.s32.totalorder %s67, %s81
      %p83 = scmp.eq.s32.totalorder %s22, 0
      %p84 = por %p82, %p83
      %s86 = sadd.s32 %s85, 1
      %p89 = scmp.eq.s32.totalorder %s16, 3
      %p90 = scmp.ne.s32.totalorder %s85, %s87
      %p91 = scmp.eq.s32.totalorder %s16, 0
      %p92 = por %p90, %p91
      %p93 = scmp.ne.s32.totalorder %s85, %s87
      %p94 = scmp.eq.s32.totalorder %s21, 3
      %p95 = por %p93, %p94
      %p96 = scmp.ne.s32.totalorder %s87, %s88
      %p97 = scmp.eq.s32.totalorder %s21, 0
      %p98 = por %p96, %p97
      %p99 = scmp.ne.s32.totalorder %s87, %s88
      %p100 = scmp.eq.s32.totalorder %s22, 3
      %p101 = por %p99, %p100
      %p103 = scmp.ne.s32.totalorder %s88, %s102
      %p104 = scmp.eq.s32.totalorder %s22, 0
      %p105 = por %p103, %p104
      %s106 = ssub.s32 %s23, %s35
      %s107 = ssub.s32 %s24, %s31
      %s108 = sor.u32 %s106, %s107
      %p109 = scmp.eq.s32.totalorder %s108, 0
      %s111 = sadd.s32 %s110, 1
      %s112 = scalar_select %p109, %s110, %s111
      %p115 = pneg %p109
      %p116 = scmp.eq.s32.totalorder %s16, 3
      %p117 = por %p115, %p116
      %p118 = scmp.ne.s32.totalorder %s110, %s113
      %p119 = scmp.eq.s32.totalorder %s16, 0
      %p120 = por %p118, %p119
      %p121 = scmp.ne.s32.totalorder %s110, %s113
      %p122 = scmp.eq.s32.totalorder %s21, 3
      %p123 = por %p121, %p122
      %p124 = scmp.ne.s32.totalorder %s113, %s114
      %p125 = scmp.eq.s32.totalorder %s21, 0
      %p126 = por %p124, %p125
      %p127 = scmp.ne.s32.totalorder %s113, %s114
      %p128 = scmp.eq.s32.totalorder %s22, 3
      %p129 = por %p127, %p128
      %p131 = scmp.ne.s32.totalorder %s114, %s130
      %p132 = scmp.eq.s32.totalorder %s22, 0
      %p133 = por %p131, %p132
      %p134 = scmp.le.s32.totalorder 1, %s16
      %p135 = scmp.lt.s32.totalorder %s16, 5
      %p136 = pnand %p134, %p135
      %p137 = pneg %p136
      // Predicated region
      $region9: #{tpu_custom_call.1} parent=5 // pred_check
        _
      $region10: #{tpu_custom_call.1} parent=5 // pred_check_branch
        %139 = sbr.rel (%p136) target = $region12
      $region11: #{tpu_custom_call.1} parent=5 // pred_region
        %s140 = ssub.s32 %s16, 1
        // Predicated region
        $region13: #{tpu_custom_call.1} parent=11 // pred_check
          %p141 = pneg %p77
        $region14: #{tpu_custom_call.1} parent=11 // pred_check_branch
          %143 = sbr.rel (%p141) target = $region16
        $region15: #{tpu_custom_call.1} parent=11 // pred_region
          %s145 = ssub.s32 3072, 3072
          %146 = vsyncadd [#allocation6], %s145
          %s147 = sshll.u32 [#allocation5], 4
          %s148 = int_to_ptr.vmem [resolvable:$true] %s147
          %153 = dma.hbm_to_vmem [thread:$0]  %s1, 3072, %s148, [#allocation6], 192, 192, 12
        $region16: #{tpu_custom_call.1} parent=11 // pred_fallthru
          _
        // Predicated region
        $region17: #{tpu_custom_call.1} parent=11 // pred_check
          %p154 = pneg %p98
        $region18: #{tpu_custom_call.1} parent=11 // pred_check_branch
          %156 = sbr.rel (%p154) target = $region20
        $region19: #{tpu_custom_call.1} parent=11 // pred_region
          _
        $region20: #{tpu_custom_call.1} parent=11 // pred_fallthru
          _
      $region12: #{tpu_custom_call.1} parent=5 // pred_fallthru
        _
      %p157 = scmp.lt.s32.totalorder %s16, 4
      // Predicated region
      $region21: #{tpu_custom_call.1} parent=5 // pred_check
        %p158 = pneg %p157
      $region22: #{tpu_custom_call.1} parent=5 // pred_check_branch
        %160 = sbr.rel (%p158) target = $region24
      $region23: #{tpu_custom_call.1} parent=5 // pred_region
        // Predicated region
        $region25: #{tpu_custom_call.1} parent=23 // pred_check
          %p161 = pneg %p50
        $region26: #{tpu_custom_call.1} parent=23 // pred_check_branch
          %163 = sbr.rel (%p161) target = $region28
        $region27: #{tpu_custom_call.1} parent=23 // pred_region
          %s164 = sand.u32 %s40, 1
          %s165 = scalar_lea.sflag [#allocation3], %s164
          %s166 = sand.u32 %s40, 1
          %s167 = smul.addr %s166, 8
          %s168 = scalar_lea.vmem [#allocation2], %s167
          %s170 = ssub.s32 128, 128
          %171 = vsyncadd %s165, %s170
          %s172 = smul.addr %s23, 2
          %s173 = sadd.s32 %s24, %s172
          %s174 = smul.addr %s173, 128
          %s175 = scalar_lea.hbm %s0, %s174
          %s177 = sshll.u32 %s168, 4
          %s178 = int_to_ptr.vmem [resolvable:$true] %s177
          %180 = dma.hbm_to_vmem [thread:$0]  %s175, 128, %s178, %s165
        $region28: #{tpu_custom_call.1} parent=23 // pred_fallthru
          _
      $region24: #{tpu_custom_call.1} parent=5 // pred_fallthru
        _
      %p181 = scmp.le.s32.totalorder 1, %s16
      %p182 = scmp.lt.s32.totalorder %s16, 5
      %p183 = pnand %p181, %p182
      %p184 = pneg %p183
      // Predicated region
      $region29: #{tpu_custom_call.1} parent=5 // pred_check
        _
      $region30: #{tpu_custom_call.1} parent=5 // pred_check_branch
        %186 = sbr.rel (%p183) target = $region32
      $region31: #{tpu_custom_call.1} parent=5 // pred_region
        %s187 = ssub.s32 %s16, 1
        %s188 = sand.u32 %s43, 1
        %s189 = scalar_lea.sflag [#allocation3], %s188
        %s190 = sand.u32 %s43, 1
        %s191 = smul.addr %s190, 8
        %s192 = scalar_lea.vmem [#allocation2], %s191
        // Predicated region
        $region33: #{tpu_custom_call.1} parent=31 // pred_check
          %p193 = pneg %p56
        $region34: #{tpu_custom_call.1} parent=31 // pred_check_branch
          %195 = sbr.rel (%p193) target = $region36
        $region35: #{tpu_custom_call.1} parent=31 // pred_region
          %196 = dma.done %s189, 128
        $region36: #{tpu_custom_call.1} parent=31 // pred_fallthru
          _
        // Predicated region
        $region37: #{tpu_custom_call.1} parent=31 // pred_check
          %p197 = pneg %p77
        $region38: #{tpu_custom_call.1} parent=31 // pred_check_branch
          %199 = sbr.rel (%p197) target = $region40
        $region39: #{tpu_custom_call.1} parent=31 // pred_region
          %200 = dma.done [#allocation6], 3072
        $region40: #{tpu_custom_call.1} parent=31 // pred_fallthru
          _
        %s201 = sand.u32 %s43, 1
        %s202 = scalar_lea.sflag [#allocation3], %s201
        %s203 = sand.u32 %s43, 1
        %s204 = smul.addr %s203, 8
        %s205 = scalar_lea.vmem [#allocation2], %s204
        %p206 = pneg %p56
        %p207 = pneg %p53
        %p208 = pneg %p77
        %p209 = pneg %p74
        %p210 = pneg %p98
        %p211 = pneg %p95
        %p212 = pneg %p126
        %p213 = pneg %p123
        %s214 = sand.u32 %s113, 1
        %s215 = scalar_lea.sflag [#allocation4], %s214
        %s216 = sand.u32 %s113, 1
        %s217 = smul.addr %s216, 12
        %s218 = scalar_lea.vmem [#allocation7], %s217
        %v220 = vld [vmem:[%s192] sm:$0xff]
        %v221 = vpack.c.bf16 %v220, %v220
        %v222 = vld [vmem:[#allocation5] sm:$0xff]
        %v223 = vld [vmem:[#allocation5 + $0x8] sm:$0xf]
        %v224 = vld [vmem:[#allocation5 + $0xc] sm:$0xff]
        %v225 = vld [vmem:[#allocation5 + $0x14] sm:$0xf]
        %v226 = vld [vmem:[#allocation5 + $0x18] sm:$0xff]
        %v227 = vld [vmem:[#allocation5 + $0x20] sm:$0xf]
        %v228 = vld [vmem:[#allocation5 + $0x24] sm:$0xff]
        %v229 = vld [vmem:[#allocation5 + $0x2c] sm:$0xf]
        %v230 = vld [vmem:[#allocation5 + $0x30] sm:$0xff]
        %v231 = vld [vmem:[#allocation5 + $0x38] sm:$0xf]
        %v232 = vld [vmem:[#allocation5 + $0x3c] sm:$0xff]
        %v233 = vld [vmem:[#allocation5 + $0x44] sm:$0xf]
        %v234 = vld [vmem:[#allocation5 + $0x48] sm:$0xff]
        %v235 = vld [vmem:[#allocation5 + $0x50] sm:$0xf]
        %v236 = vld [vmem:[#allocation5 + $0x54] sm:$0xff]
        %v237 = vld [vmem:[#allocation5 + $0x5c] sm:$0xf]
        %v238 = vld [vmem:[#allocation5 + $0x60] sm:$0xff]
        %v239 = vld [vmem:[#allocation5 + $0x68] sm:$0xf]
        %v240 = vld [vmem:[#allocation5 + $0x6c] sm:$0xff]
        %v241 = vld [vmem:[#allocation5 + $0x74] sm:$0xf]
        %v242 = vld [vmem:[#allocation5 + $0x78] sm:$0xff]
        %v243 = vld [vmem:[#allocation5 + $0x80] sm:$0xf]
        %v244 = vld [vmem:[#allocation5 + $0x84] sm:$0xff]
        %v245 = vld [vmem:[#allocation5 + $0x8c] sm:$0xf]
        %v246 = vld [vmem:[#allocation5 + $0x90] sm:$0xff]
        %v247 = vld [vmem:[#allocation5 + $0x98] sm:$0xf]
        %v248 = vld [vmem:[#allocation5 + $0x9c] sm:$0xff]
        %v249 = vld [vmem:[#allocation5 + $0xa4] sm:$0xf]
        %v250 = vld [vmem:[#allocation5 + $0xa8] sm:$0xff]
        %v251 = vld [vmem:[#allocation5 + $0xb0] sm:$0xf]
        %v252 = vld [vmem:[#allocation5 + $0xb4] sm:$0xff]
        %v253 = vld [vmem:[#allocation5 + $0xbc] sm:$0xf]
        %v254 = vld [vmem:[%s2] sm:$0x7]
        %v256 = vlaneseq
        %v257 = vshrl.u32 %v256, 7
        %v258 = vsub.s32 0, %v257
        %v259 = vrot.slane %v254, %v258
        %v260 = vlaneseq
        %v261 = vshrl.u32 %v260, 7
        %v262 = vsub.s32 1, %v261
        %v263 = vrot.slane %v254, %v262
        %v264 = vlaneseq
        %v265 = vshrl.u32 %v264, 7
        %v266 = vsub.s32 2, %v265
        %v267 = vrot.slane %v254, %v266
        %v303 = vunpack.c.l.b16 %v222
        %v304 = vunpack.c.h.b16 %v222
        %v305 = vunpack.c.l.b16 %v223
        %v306 = vunpack.c.l.b16 %v224
        %v307 = vunpack.c.h.b16 %v224
        %v308 = vunpack.c.l.b16 %v225
        %v309 = vunpack.c.l.b16 %v226
        %v310 = vunpack.c.h.b16 %v226
        %v311 = vunpack.c.l.b16 %v227
        %v312 = vunpack.c.l.b16 %v228
        %v313 = vunpack.c.h.b16 %v228
        %v314 = vunpack.c.l.b16 %v229
        %v315 = vunpack.c.l.b16 %v230
        %v316 = vunpack.c.h.b16 %v230
        %v317 = vunpack.c.l.b16 %v231
        %v318 = vunpack.c.l.b16 %v232
        %v319 = vunpack.c.h.b16 %v232
        %v320 = vunpack.c.l.b16 %v233
        %v321 = vunpack.c.l.b16 %v234
        %v322 = vunpack.c.h.b16 %v234
        %v323 = vunpack.c.l.b16 %v235
        %v324 = vunpack.c.l.b16 %v236
        %v325 = vunpack.c.h.b16 %v236
        %v326 = vunpack.c.l.b16 %v237
        %v327 = vunpack.c.l.b16 %v238
        %v328 = vunpack.c.h.b16 %v238
        %v329 = vunpack.c.l.b16 %v239
        %v330 = vunpack.c.l.b16 %v240
        %v331 = vunpack.c.h.b16 %v240
        %v332 = vunpack.c.l.b16 %v241
        %v333 = vunpack.c.l.b16 %v242
        %v334 = vunpack.c.h.b16 %v242
        %v335 = vunpack.c.l.b16 %v243
        %v336 = vunpack.c.l.b16 %v244
        %v337 = vunpack.c.h.b16 %v244
        %v338 = vunpack.c.l.b16 %v245
        %v339 = vunpack.c.l.b16 %v246
        %v340 = vunpack.c.h.b16 %v246
        %v341 = vunpack.c.l.b16 %v247
        %v342 = vunpack.c.l.b16 %v248
        %v343 = vunpack.c.h.b16 %v248
        %v344 = vunpack.c.l.b16 %v249
        %v345 = vunpack.c.l.b16 %v250
        %v346 = vunpack.c.h.b16 %v250
        %v347 = vunpack.c.l.b16 %v251
        %v348 = vunpack.c.l.b16 %v252
        %v349 = vunpack.c.h.b16 %v252
        %v350 = vunpack.c.l.b16 %v253
        %v351 = vpack.c.b16 %v306, %v303
        %v352 = vpack.c.b16 %v307, %v304
        %v353 = vpack.c.b16 %v308, %v305
        %v354 = vpack.c.b16 %v312, %v309
        %v355 = vpack.c.b16 %v313, %v310
        %v356 = vpack.c.b16 %v314, %v311
        %v357 = vpack.c.b16 %v318, %v315
        %v358 = vpack.c.b16 %v319, %v316
        %v359 = vpack.c.b16 %v320, %v317
        %v360 = vpack.c.b16 %v324, %v321
        %v361 = vpack.c.b16 %v325, %v322
        %v362 = vpack.c.b16 %v326, %v323
        %v363 = vpack.c.b16 %v330, %v327
        %v364 = vpack.c.b16 %v331, %v328
        %v365 = vpack.c.b16 %v332, %v329
        %v366 = vpack.c.b16 %v336, %v333
        %v367 = vpack.c.b16 %v337, %v334
        %v368 = vpack.c.b16 %v338, %v335
        %v369 = vpack.c.b16 %v342, %v339
        %v370 = vpack.c.b16 %v343, %v340
        %v371 = vpack.c.b16 %v344, %v341
        %v372 = vpack.c.b16 %v348, %v345
        %v373 = vpack.c.b16 %v349, %v346
        %v374 = vpack.c.b16 %v350, %v347
        %399 = vmatprep.subr.bf16.mxu0 %v352
        %400 = vmatpush1.bf16.msra.mxu0 %v351
        %401 = vmatprep.subr.bf16.mxu0 %v355
        %402 = vmatpush1.bf16.msra.mxu0 %v354
        %403 = vmatprep.subr.bf16.mxu0 %v358
        %404 = vmatpush1.bf16.msra.mxu0 %v357
        %405 = vmatprep.subr.bf16.mxu0 %v361
        %406 = vmatpush1.bf16.msra.mxu0 %v360
        %407 = vmatprep.subr.bf16.mxu0 %v364
        %408 = vmatpush1.bf16.msra.mxu0 %v363
        %409 = vmatprep.subr.bf16.mxu0 %v367
        %410 = vmatpush1.bf16.msra.mxu0 %v366
        %411 = vmatprep.subr.bf16.mxu0 %v370
        %412 = vmatpush1.bf16.msra.mxu0 %v369
        %413 = vmatprep.subr.bf16.mxu0 %v373
        %414 = vmatpush1.bf16.msra.mxu0 %v372
        %415 = vmatprep.subr.bf16.mxu0 0
        %416 = vmatpush1.bf16.msra.mxu0 0
        %417 = vmatprep.subr.bf16.mxu0 0
        %418 = vmatpush1.bf16.msra.mxu0 0
        %419 = vmatprep.subr.bf16.mxu0 0
        %420 = vmatpush1.bf16.msra.mxu0 0
        %421 = vmatprep.subr.bf16.mxu0 0
        %422 = vmatpush1.bf16.msra.mxu0 0
        %423 = vmatprep.subr.bf16.mxu0 0
        %424 = vmatpush1.bf16.msra.mxu0 0
        %425 = vmatprep.subr.bf16.mxu0 0
        %426 = vmatpush1.bf16.msra.mxu0 0
        %427 = vmatprep.subr.bf16.mxu0 0
        %428 = vmatpush1.bf16.msra.mxu0 0
        %429 = vmatprep.subr.bf16.mxu0 0
        %430 = vmatpush1.bf16.msra.mxu0 0
        %431 = vmatprep.mubr.bf16.mxu0 0
        %432 = vmatmul.mubr.bf16.gmra.mrb[0].mxu0 %v221
        %v433 = vpop.f32.mrb[0].mxu0
        %v434 = vadd.f32 %v259, %v433
        %v435 = vpop.f32.mrb[0].mxu0
        %v436 = vadd.f32 %v263, %v435
        %v437 = vpop.f32.mrb[0].mxu0
        %v438 = vpop.f32.mrb[0].mxu0
        %439 = vdwg.mxu0
        %440 = vmatprep.subr.bf16.mxu0 0
        %441 = vmatpush1.bf16.msra.mxu0 %v353
        %442 = vmatprep.subr.bf16.mxu0 0
        %443 = vmatpush1.bf16.msra.mxu0 %v356
        %444 = vmatprep.subr.bf16.mxu0 0
        %445 = vmatpush1.bf16.msra.mxu0 %v359
        %446 = vmatprep.subr.bf16.mxu0 0
        %447 = vmatpush1.bf16.msra.mxu0 %v362
        %448 = vmatprep.subr.bf16.mxu0 0
        %449 = vmatpush1.bf16.msra.mxu0 %v365
        %450 = vmatprep.subr.bf16.mxu0 0
        %451 = vmatpush1.bf16.msra.mxu0 %v368
        %452 = vmatprep.subr.bf16.mxu0 0
        %453 = vmatpush1.bf16.msra.mxu0 %v371
        %454 = vmatprep.subr.bf16.mxu0 0
        %455 = vmatpush1.bf16.msra.mxu0 %v374
        %456 = vmatprep.subr.bf16.mxu0 0
        %457 = vmatpush1.bf16.msra.mxu0 0
        %458 = vmatprep.subr.bf16.mxu0 0
        %459 = vmatpush1.bf16.msra.mxu0 0
        %460 = vmatprep.subr.bf16.mxu0 0
        %461 = vmatpush1.bf16.msra.mxu0 0
        %462 = vmatprep.subr.bf16.mxu0 0
        %463 = vmatpush1.bf16.msra.mxu0 0
        %464 = vmatprep.subr.bf16.mxu0 0
        %465 = vmatpush1.bf16.msra.mxu0 0
        %466 = vmatprep.subr.bf16.mxu0 0
        %467 = vmatpush1.bf16.msra.mxu0 0
        %468 = vmatprep.subr.bf16.mxu0 0
        %469 = vmatpush1.bf16.msra.mxu0 0
        %470 = vmatprep.subr.bf16.mxu0 0
        %471 = vmatpush1.bf16.msra.mxu0 0
        %472 = vmatprep.mubr.bf16.mxu0 0
        %473 = vmatmul.mubr.bf16.gmra.mrb[0].mxu0 %v221
        %v474 = vpop.f32.mrb[0].mxu0
        %v475 = vadd.f32 %v267, %v474
        %v476 = vpop.f32.mrb[0].mxu0
        %v477 = vpop.f32.mrb[0].mxu0
        %v478 = vpop.f32.mrb[0].mxu0
        %479 = vdwg.mxu0
        %v480 = vpack.c.bf16 %v434, %v434
        %v481 = vpack.c.bf16 %v436, %v436
        %v482 = vpack.c.bf16 %v475, %v475
        %v486 = vunpack.c.l.b16 %v480
        %v487 = vunpack.c.l.b16 %v481
        %v488 = vunpack.c.l.b16 %v482
        %v489 = vpack.c.b16 %v487, %v486
        %v490 = vpack.c.b16 %v488, %v488
        %493 = vst [vmem:[%s218] sm:$0xff] %v489
        %494 = vst [vmem:[%s218 + $0x8] sm:$0xf] %v490
        %s495 = sand.u32 %s113, 1
        %s496 = scalar_lea.sflag [#allocation4], %s495
        %s497 = sand.u32 %s113, 1
        %s498 = smul.addr %s497, 12
        %s499 = scalar_lea.vmem [#allocation7], %s498
        // Predicated region
        $region41: #{tpu_custom_call.1} parent=31 // pred_check
          %p500 = pneg %p123
        $region42: #{tpu_custom_call.1} parent=31 // pred_check_branch
          %502 = sbr.rel (%p500) target = $region44
        $region43: #{tpu_custom_call.1} parent=31 // pred_region
          %s504 = ssub.s32 192, 192
          %505 = vsyncadd %s496, %s504
          %s506 = smul.addr %s26, 3
          %s507 = smul.addr %s25, 6
          %s508 = sadd.s32 %s506, %s507
          %s509 = smul.addr %s508, 64
          %s510 = scalar_lea.hbm %s3, %s509
          %s512 = sshll.u32 %s499, 4
          %s513 = int_to_ptr.vmem [resolvable:$true] %s512
          %515 = dma.vmem_to_hbm [thread:$0]  %s513, 192, %s510, %s496
        $region44: #{tpu_custom_call.1} parent=31 // pred_fallthru
          _
      $region32: #{tpu_custom_call.1} parent=5 // pred_fallthru
        _
      %p516 = scmp.le.s32.totalorder 2, %s16
      // Predicated region
      $region45: #{tpu_custom_call.1} parent=5 // pred_check
        %p517 = pneg %p516
      $region46: #{tpu_custom_call.1} parent=5 // pred_check_branch
        %519 = sbr.rel (%p517) target = $region48
      $region47: #{tpu_custom_call.1} parent=5 // pred_region
        %s520 = ssub.s32 %s16, 2
        // Predicated region
        $region49: #{tpu_custom_call.1} parent=47 // pred_check
          %p521 = pneg %p129
        $region50: #{tpu_custom_call.1} parent=47 // pred_check_branch
          %523 = sbr.rel (%p521) target = $region52
        $region51: #{tpu_custom_call.1} parent=47 // pred_region
          %s524 = sand.u32 %s114, 1
          %s525 = scalar_lea.sflag [#allocation4], %s524
          %s526 = sand.u32 %s114, 1
          %s527 = smul.addr %s526, 12
          %s528 = scalar_lea.vmem [#allocation7], %s527
          %529 = dma.done %s525, 192
        $region52: #{tpu_custom_call.1} parent=47 // pred_fallthru
          _
      $region48: #{tpu_custom_call.1} parent=5 // pred_fallthru
        _
    $region6: #{tpu_custom_call.1} parent=1 // loop_footer
      %s20 = sadd.s32 1, %s16
    $region7: #{tpu_custom_call.1} parent=1 // loop_footer_branch
      %15 = sbr.rel target = $region3
    $region8: #{tpu_custom_call.1} parent=1 // loop_exit
      _
    %530 = vsyncpa [#allocation3], 1
    %s531 = scalar_lea.sflag [#allocation3], 1
    %532 = vsyncpa %s531, 1
    %533 = vsyncpa [#allocation6], 1
    %534 = vsyncpa [#allocation4], 1
    %s535 = scalar_lea.sflag [#allocation4], 1
    %536 = vsyncpa %s535, 1

</llo_original>
